<compile_context>
chip_gen: v5e
topology: v5e:2x2
jax: 0.10.0
libtpu: 0.0.40
codegen_flags: <defaults>
</compile_context>

<pallas_src>
import jax
import jax.numpy as jnp
from jax.experimental import pallas as pl
from jax.experimental.pallas import tpu as pltpu

# ---- small, module-consistent config (stand-ins for 500 / 2097152) ----------
NCLASS    = 4
EMBED_DIM = 8
WINDOW    = 16                        # stands in for window_size = 500
INPUT_LEN = 2048                      # stands in for padding_len = 2097152
K         = WINDOW * EMBED_DIM        # flattened conv receptive field (4000 at prod)
CH        = 128                       # conv output channels
TNW       = 32                        # NW tile per grid step (use 512-1024 at production)
NSPLIT    = 2                         # window-axis split for v7x's two TensorCores

assert TNW % 8 == 0


# ------------------------------ Pallas kernel --------------------------------
def malconv_kernel(x_ref, w12_ref, b12_ref, out_ref):
    """One (batch, split, window-tile) grid step.

    out_ref holds the (8, CH) running max for this (batch, split); its index_map is
    constant in the window-tile axis, so the block stays resident in VMEM across it.
    """
    n = pl.program_id(2)

    @pl.when(n == 0)
    def _():
        out_ref[...] = jnp.full(out_ref.shape, -jnp.inf, dtype=jnp.float32)

    x = x_ref[0]                                                     # (TNW, K) bf16
    # fused conv_1||conv_2 (stride==kernel conv as one N=256 matmul), f32 accumulate
    c = jnp.dot(x, w12_ref[...], preferred_element_type=jnp.float32) + b12_ref[...]
    c1 = c[:, :CH]                                                   # conv_1 pre-activation
    z2 = c[:, CH:]                                                   # conv_2 pre-activation
    # sigmoid via EUP exp + EUP approximate reciprocal (keeps the VPU slot free)
    g = pl.reciprocal(1.0 + jnp.exp(-z2), approx=True)
    gated = c1 * g                                                   # (TNW, CH) f32
    # fold this tile into the (8, CH) running max: pure vreg vmax, no per-tile XLU reduce
    tile_max = jnp.max(gated.reshape(TNW // 8, 8, CH), axis=0)       # (8, CH)
    out_ref[0, 0] = jnp.maximum(out_ref[0, 0], tile_max)


# ------------------------------ wrapper ---------------------------------------
def pad_fixed(seq):
    """ByteMalConv._pad_fixed: truncate or zero-pad a 1-D byte sequence."""
    n = seq.shape[0]
    if n >= INPUT_LEN:
        return seq[:INPUT_LEN]
    return jnp.pad(seq, (0, INPUT_LEN - n))


def malconv_forward(tokens, params):
    """tokens: (B, INPUT_LEN) int32 byte ids. Returns (B, NCLASS) float32."""
    B = tokens.shape[0]

    # windows: trailing partial window is dropped, matching Conv1d(stride=window)
    nw_raw = INPUT_LEN // WINDOW
    tok_win = tokens[:, :nw_raw * WINDOW].reshape(B, nw_raw, WINDOW)

    # pad NW up to a multiple of NSPLIT*TNW with all-zero windows (zero tokens embed to
    # zero rows, so padded windows contribute bias1*sigmoid(bias2), same as PyTorch's
    # zero-padded tail).
    tiles = NSPLIT * TNW
    nw = ((nw_raw + tiles - 1) // tiles) * tiles
    if nw != nw_raw:
        tok_win = jnp.pad(tok_win, ((0, 0), (0, nw - nw_raw), (0, 0)))
    nt = nw // tiles                                                 # window tiles per split

    # glue: embedding gather (padding_idx=0 row is zero) + window flattening, bf16 MXU
    # operand, NO lane padding of K (full-dim minor block).
    emb_tbl = params["embedding"].astype(jnp.bfloat16)               # (256, 8)
    x_win = jnp.take(emb_tbl, tok_win, axis=0).reshape(B, nw, K)     # (B, nw, K) bf16

    # glue: conv weights (out, in, k) -> (k*in, out), fused side-by-side; bf16 for MXU
    w1m = params["conv1_w"].transpose(2, 1, 0).reshape(K, CH)
    w2m = params["conv2_w"].transpose(2, 1, 0).reshape(K, CH)
    w12 = jnp.concatenate([w1m, w2m], axis=1).astype(jnp.bfloat16)   # (K, 2*CH)
    b12 = jnp.concatenate([params["conv1_b"], params["conv2_b"]]
                          ).reshape(1, 2 * CH).astype(jnp.float32)   # (1, 2*CH)

    resident = lambda shape: pl.BlockSpec(shape, lambda b, s, n: tuple(0 for _ in shape))

    out4 = pl.pallas_call(
        malconv_kernel,
        out_shape=jax.ShapeDtypeStruct((B, NSPLIT, 8, CH), jnp.float32),
        grid_spec=pltpu.PrefetchScalarGridSpec(
            num_scalar_prefetch=0,
            grid=(B, NSPLIT, nt),                                    # batch x core-split x tiles
            in_specs=[
                pl.BlockSpec((1, TNW, K), lambda b, s, n: (b, s * nt + n, 0)),
                resident((K, 2 * CH)),                               # fused conv weights
                resident((1, 2 * CH)),                               # fused conv bias
            ],
            out_specs=pl.BlockSpec((1, 1, 8, CH), lambda b, s, n: (b, s, 0, 0)),
        ),
        compiler_params=pltpu.CompilerParams(
            dimension_semantics=("parallel", "parallel", "arbitrary"),
            vmem_limit_bytes=48 * 1024 * 1024,                       # prod-tile headroom; < v7x 64 MiB
        ),
    )(x_win, w12, b12)

    # combine the per-split / per-sublane partial maxes, then the tiny FC head (f32)
    pooled = jnp.max(out4, axis=(1, 2))                              # (B, CH)
    h = pooled @ params["fc1_w"].T + params["fc1_b"]
    return h @ params["fc2_w"].T + params["fc2_b"]


# ------------------------------ reference (pure JAX, same dtype policy) -------
def reference_forward(tokens, params):
    B = tokens.shape[0]
    nw = INPUT_LEN // WINDOW
    emb = jnp.take(params["embedding"], tokens[:, :nw * WINDOW], axis=0)
    xw = emb.reshape(B, nw, K).astype(jnp.bfloat16)
    w1m = params["conv1_w"].transpose(2, 1, 0).reshape(K, CH).astype(jnp.bfloat16)
    w2m = params["conv2_w"].transpose(2, 1, 0).reshape(K, CH).astype(jnp.bfloat16)
    c1 = jnp.dot(xw, w1m, preferred_element_type=jnp.float32) + params["conv1_b"]
    g = jax.nn.sigmoid(jnp.dot(xw, w2m, preferred_element_type=jnp.float32) + params["conv2_b"])
    pooled = jnp.max(c1 * g, axis=1)                                 # (B, CH) f32
    h = pooled @ params["fc1_w"].T + params["fc1_b"]
    return h @ params["fc2_w"].T + params["fc2_b"]


# ------------------------------ params ----------------------------------------
def init_params(key):
    ks = jax.random.split(key, 9)
    emb = jax.random.normal(ks[0], (256, EMBED_DIM), jnp.float32) * 0.1
    emb = emb.at[0].set(0.0)                                         # padding_idx=0
    return dict(
        embedding=emb,
        conv1_w=jax.random.normal(ks[1], (CH, EMBED_DIM, WINDOW), jnp.float32) * 0.05,
        conv1_b=jax.random.normal(ks[2], (CH,), jnp.float32) * 0.05,
        conv2_w=jax.random.normal(ks[3], (CH, EMBED_DIM, WINDOW), jnp.float32) * 0.05,
        conv2_b=jax.random.normal(ks[4], (CH,), jnp.float32) * 0.05,
        fc1_w=jax.random.normal(ks[5], (CH, CH), jnp.float32) * 0.05,   # (out, in)
        fc1_b=jax.random.normal(ks[6], (CH,), jnp.float32) * 0.05,
        fc2_w=jax.random.normal(ks[7], (NCLASS, CH), jnp.float32) * 0.05,
        fc2_b=jax.random.normal(ks[8], (NCLASS,), jnp.float32) * 0.05,
    )


# ------------------------------ main -------------------------------------------
if __name__ == "__main__":
    key = jax.random.PRNGKey(0)
    pkey, k1, k2 = jax.random.split(key, 3)
    params = init_params(pkey)

    # two variable-length byte sequences (ByteMalConv pads one, truncates the other)
    seq_a = jax.random.randint(k1, (1500,), 0, 256, dtype=jnp.int32)   # shorter -> zero-padded
    seq_b = jax.random.randint(k2, (2500,), 0, 256, dtype=jnp.int32)   # longer  -> truncated
    tokens = jnp.stack([pad_fixed(seq_a), pad_fixed(seq_b)])           # (2, INPUT_LEN)

    out = malconv_forward(tokens, params)
    out = jax.block_until_ready(out)

    ref = reference_forward(tokens, params)
    assert out.shape == (2, NCLASS), out.shape
    assert jnp.allclose(out, ref, atol=2e-3, rtol=2e-3), (out, ref)

    print("KERNEL_OK")
</pallas_src>

<mosaic_0001>
module attributes {stable_mosaic.version = 11 : i64} {
  func.func @malconv_kernel(%arg0: i32, %arg1: i32, %arg2: i32, %arg3: memref<1x32x128xbf16, #tpu.memory_space<vmem>>, %arg4: memref<128x256xbf16, #tpu.memory_space<vmem>>, %arg5: memref<1x256xf32, #tpu.memory_space<vmem>>, %arg6: memref<1x1x8x128xf32, #tpu.memory_space<vmem>>) attributes {dimension_semantics = [#tpu.dimension_semantics<parallel>, #tpu.dimension_semantics<parallel>, #tpu.dimension_semantics<arbitrary>], iteration_bounds = array<i64: 2, 2, 2>, scalar_prefetch = 0 : i64, scratch_operands = 0 : i64, tpu.core_type = #tpu.core_type<tc>, window_params = [{transform_indices = @transform_0, window_bounds = array<i64: 1, 32, 128>}, {pipeline_mode = #tpu.pipeline_mode<synchronous>, transform_indices = @transform_1, window_bounds = array<i64: 128, 256>}, {pipeline_mode = #tpu.pipeline_mode<synchronous>, transform_indices = @transform_2, window_bounds = array<i64: 1, 256>}, {transform_indices = @transform_3, window_bounds = array<i64: 1, 1, 8, 128>}]} {
    %c0_i32 = arith.constant 0 : i32
    %0 = arith.cmpi eq, %arg2, %c0_i32 : i32
    %1 = arith.extui %0 : i1 to i32
    %c0_i32_0 = arith.constant 0 : i32
    %2 = arith.cmpi ne, %1, %c0_i32_0 : i32
    scf.if %2 {
      %cst_18 = arith.constant 0xFF800000 : f32
      %27 = vector.broadcast %cst_18 : f32 to vector<1x1x8x128xf32>
      %c0_19 = arith.constant 0 : index
      %c0_20 = arith.constant 0 : index
      %c0_21 = arith.constant 0 : index
      %c0_22 = arith.constant 0 : index
      %28 = vector.load %arg6[%c0_19, %c0_20, %c0_21, %c0_22] : memref<1x1x8x128xf32, #tpu.memory_space<vmem>>, vector<1x1x8x128xf32>
      tpu.vector_store %arg6[%c0_19, %c0_20, %c0_21, %c0_22], %27 {strides = array<i32>} : memref<1x1x8x128xf32, #tpu.memory_space<vmem>>, vector<1x1x8x128xf32>,
    } else {
    }
    %c0 = arith.constant 0 : index
    %c0_1 = arith.constant 0 : index
    %c0_2 = arith.constant 0 : index
    %3 = vector.load %arg3[%c0, %c0_1, %c0_2] : memref<1x32x128xbf16, #tpu.memory_space<vmem>>, vector<1x32x128xbf16>
    %4 = vector.shape_cast %3 : vector<1x32x128xbf16> to vector<32x128xbf16>
    %c0_3 = arith.constant 0 : index
    %c0_4 = arith.constant 0 : index
    %5 = vector.load %arg4[%c0_3, %c0_4] : memref<128x256xbf16, #tpu.memory_space<vmem>>, vector<128x256xbf16>
    %cst = arith.constant dense<0.000000e+00> : vector<32x256xf32>
    %6 = tpu.matmul %4, %5, %cst {dimension_numbers = #tpu.dot_dimension_numbers<[1], [0], [0], [1], [0, 0, 1, 1], [], []>} : vector<32x128xbf16>, vector<128x256xbf16>, vector<32x256xf32> -> vector<32x256xf32>
    %c0_5 = arith.constant 0 : index
    %c0_6 = arith.constant 0 : index
    %7 = vector.load %arg5[%c0_5, %c0_6] : memref<1x256xf32, #tpu.memory_space<vmem>>, vector<1x256xf32>
    %8 = vector.broadcast %7 : vector<1x256xf32> to vector<32x256xf32>
    %9 = arith.addf %6, %8 : vector<32x256xf32>
    %10 = vector.extract_strided_slice %9 {offsets = [0, 0], sizes = [32, 128], strides = [1, 1]} : vector<32x256xf32> to vector<32x128xf32>
    %11 = vector.extract_strided_slice %9 {offsets = [0, 128], sizes = [32, 128], strides = [1, 1]} : vector<32x256xf32> to vector<32x128xf32>
    %cst_7 = arith.constant 0.000000e+00 : f32
    %12 = vector.broadcast %cst_7 : f32 to vector<32x128xf32>
    %13 = arith.subf %12, %11 : vector<32x128xf32>
    %14 = math.exp %13 : vector<32x128xf32>
    %cst_8 = arith.constant 1.000000e+00 : f32
    %15 = vector.broadcast %cst_8 : f32 to vector<32x128xf32>
    %16 = arith.addf %15, %14 : vector<32x128xf32>
    %17 = tpu.reciprocal %16 {approx = true} : vector<32x128xf32> -> vector<32x128xf32>
    %18 = arith.mulf %10, %17 : vector<32x128xf32>
    %19 = vector.shape_cast %18 : vector<32x128xf32> to vector<4x8x128xf32>
    %cst_9 = arith.constant dense<0xFF800000> : vector<8x128xf32>
    %20 = vector.multi_reduction <maximumf>, %19, %cst_9 [0] : vector<4x8x128xf32> to vector<8x128xf32>
    %c0_10 = arith.constant 0 : index
    %c0_11 = arith.constant 0 : index
    %c0_12 = arith.constant 0 : index
    %c0_13 = arith.constant 0 : index
    %21 = vector.load %arg6[%c0_10, %c0_11, %c0_12, %c0_13] : memref<1x1x8x128xf32, #tpu.memory_space<vmem>>, vector<1x1x8x128xf32>
    %22 = vector.shape_cast %21 : vector<1x1x8x128xf32> to vector<8x128xf32>
    %23 = arith.maximumf %22, %20 : vector<8x128xf32>
    %c0_14 = arith.constant 0 : index
    %c0_15 = arith.constant 0 : index
    %c0_16 = arith.constant 0 : index
    %c0_17 = arith.constant 0 : index
    %24 = vector.load %arg6[%c0_14, %c0_15, %c0_16, %c0_17] : memref<1x1x8x128xf32, #tpu.memory_space<vmem>>, vector<1x1x8x128xf32>
    %25 = vector.shape_cast %24 : vector<1x1x8x128xf32> to vector<8x128xf32>
    %26 = vector.shape_cast %23 : vector<8x128xf32> to vector<1x1x8x128xf32>
    tpu.vector_store %arg6[%c0_14, %c0_15, %c0_16, %c0_17], %26 {strides = array<i32>} : memref<1x1x8x128xf32, #tpu.memory_space<vmem>>, vector<1x1x8x128xf32>,
    return
  }
  func.func @transform_0(%arg0: i32, %arg1: i32, %arg2: i32) -> (i32, i32, i32) {
    %c2_i32 = arith.constant 2 : i32
    %0 = arith.muli %arg1, %c2_i32 : i32
    %1 = arith.addi %0, %arg2 : i32
    %c0_i32 = arith.constant 0 : i32
    %c0_i32_0 = arith.constant 0 : i32
    return %arg0, %1, %c0_i32 : i32, i32, i32
  }
  func.func @transform_1(%arg0: i32, %arg1: i32, %arg2: i32) -> (i32, i32) {
    %c0_i32 = arith.constant 0 : i32
    %c0_i32_0 = arith.constant 0 : i32
    %c0_i32_1 = arith.constant 0 : i32
    return %c0_i32, %c0_i32_0 : i32, i32
  }
  func.func @transform_2(%arg0: i32, %arg1: i32, %arg2: i32) -> (i32, i32) {
    %c0_i32 = arith.constant 0 : i32
    %c0_i32_0 = arith.constant 0 : i32
    %c0_i32_1 = arith.constant 0 : i32
    return %c0_i32, %c0_i32_0 : i32, i32
  }
  func.func @transform_3(%arg0: i32, %arg1: i32, %arg2: i32) -> (i32, i32, i32, i32) {
    %c0_i32 = arith.constant 0 : i32
    %c0_i32_0 = arith.constant 0 : i32
    %c0_i32_1 = arith.constant 0 : i32
    return %arg0, %arg1, %c0_i32, %c0_i32_0 : i32, i32, i32, i32
  }
}

</mosaic_0001>

<llo_original>
// kernel: tpu_custom_call.1
$region0: #{tpu_custom_call.1}
  #allocation0 [shape = 'u32[]', space=smem, size = 0x4, offset = 0x4, fixed_abs, tag = 'smem constant byte address 0x4 - core index']
  #allocation1 [shape = 'u32[72,128]{1,0:T(1,128)}', space=vmem, size = 0x9000, scoped, tag = 'internal scratch']
  %s0 = inlined_call_operand.hbm [shape: bf16[2,128,128], index: 0, kind: input, shape index: {}]
  %s1 = inlined_call_operand.hbm [shape: bf16[128,256], index: 1, kind: input, shape index: {}]
  %s2 = inlined_call_operand.hbm [shape: f32[1,256], index: 2, kind: input, shape index: {}]
  %s3 = inlined_call_operand.hbm [shape: f32[2,2,8,128], index: 3, kind: output, shape index: {}]
  %s4 = sld [smem:[#allocation0]]
  $region61: #{tpu_custom_call.1} parent=0
    _
  %s6 = ssub.s32 1, %s4
  %s7 = scalar_select 0, %s6, %s4
  $region1: #{tpu_custom_call.1} parent=0
    #allocation2 [shape = 'u8[16384]{0}', space=vmem, size = 0x4000, scoped, tag = 'input window, operand 0']
    #allocation3 [shape = 's32[2]{0}', space=sflag, size = 0x8, scoped, tag = 'scoped memory for tpu_custom_call.1']
    #allocation4 [shape = 's32[2]{0}', space=sflag, size = 0x8, scoped, tag = 'scoped memory for tpu_custom_call.1']
    #allocation5 [shape = 'u8[65536]{0}', space=vmem, size = 0x10000, scoped, tag = 'input window, operand 1, single buffered']
    #allocation6 [shape = 's32[1]{0}', space=sflag, size = 0x4, scoped, tag = 'scoped memory for tpu_custom_call.1']
    #allocation7 [shape = 'u8[1024]{0}', space=vmem, size = 0x400, scoped, tag = 'input window, operand 2, single buffered']
    #allocation8 [shape = 'u8[8192]{0}', space=vmem, size = 0x2000, scoped, tag = 'output window, operand 0']
    %8 = vsyncpa [#allocation3], 0
    %s9 = scalar_lea.sflag [#allocation3], 1
    %10 = vsyncpa %s9, 0
    %11 = vsyncpa [#allocation6], 0
    %12 = vsyncpa [#allocation4], 0
    %s13 = scalar_lea.sflag [#allocation4], 1
    %14 = vsyncpa %s13, 0
    loop: start=0, step=1, limit=10
    $region2: #{tpu_custom_call.1} parent=1 // loop_pre_header
      _
    $region3: #{tpu_custom_call.1} parent=1 // loop_header
      %s16 = sphi 0, %s20
      %p17 = scmp.ge.s32.totalorder %s16, 10
      %s23 = sphi 0, %s42
      %s24 = sphi 0, %s38
      %s25 = sphi 0, %s34
      %s26 = sphi 0, %s23
      %s27 = sphi 0, %s24
      %s28 = sphi 0, %s25
      %s29 = sphi 0, %s26
      %s30 = sphi 0, %s27
      %s31 = sphi 0, %s28
      %s51 = sphi 0, %s53
      %s54 = sphi 0, %s51
      %s55 = sphi 0, %s54
      %s71 = sphi 0, %s55
      %s75 = sphi 0, %s75
      %s77 = sphi 0, %s75
      %s78 = sphi 0, %s77
      %s92 = sphi 0, %s78
      %s96 = sphi 0, %s96
      %s98 = sphi 0, %s96
      %s99 = sphi 0, %s98
      %s113 = sphi 0, %s99
      %s121 = sphi 0, %s123
      %s124 = sphi 0, %s121
      %s125 = sphi 0, %s124
      %s141 = sphi 0, %s125
    $region4: #{tpu_custom_call.1} parent=1 // loop_header_branch
      %19 = sbr.rel (%p17) target = $region8
    $region5: #{tpu_custom_call.1} parent=1 // loop_body
      %s21 = ssub.s32 %s16, 1
      %s22 = ssub.s32 %s16, 2
      %s32 = sadd.s32 1, %s25
      %p33 = scmp.ge.s32.totalorder %s32, 2
      %s34 = scalar_select %p33, 0, %s32
      %s35 = sadd.s32 1, %s24
      %s36 = scalar_select %p33, %s35, %s24
      %p37 = scmp.ge.s32.totalorder %s36, 2
      %s38 = scalar_select %p37, 0, %s36
      %s39 = sadd.s32 1, %s23
      %s40 = scalar_select %p37, %s39, %s23
      %p41 = scmp.ge.s32.totalorder %s40, 2
      %s42 = scalar_select %p41, 0, %s40
      %s43 = smul.u32 %s24, 2
      %s44 = sadd.s32 %s43, %s25
      %s45 = smul.u32 %s38, 2
      %s46 = sadd.s32 %s45, %s34
      %s47 = ssub.s32 %s23, %s42
      %s48 = ssub.s32 %s44, %s46
      %s49 = sor.u32 %s47, %s48
      %p50 = scmp.eq.s32.totalorder %s49, 0
      %s52 = sadd.s32 %s51, 1
      %s53 = scalar_select %p50, %s51, %s52
      %p56 = pneg %p50
      %p57 = scmp.eq.s32.totalorder %s16, 7
      %p58 = por %p56, %p57
      %p59 = scmp.ne.s32.totalorder %s51, %s54
      %p60 = scmp.eq.s32.totalorder %s16, 0
      %p61 = por %p59, %p60
      %p62 = scmp.ne.s32.totalorder %s51, %s54
      %p63 = scmp.eq.s32.totalorder %s21, 7
      %p64 = por %p62, %p63
      %p65 = scmp.ne.s32.totalorder %s54, %s55
      %p66 = scmp.eq.s32.totalorder %s21, 0
      %p67 = por %p65, %p66
      %p68 = scmp.ne.s32.totalorder %s54, %s55
      %p69 = scmp.eq.s32.totalorder %s22, 7
      %p70 = por %p68, %p69
      %p72 = scmp.ne.s32.totalorder %s55, %s71
      %p73 = scmp.eq.s32.totalorder %s22, 0
      %p74 = por %p72, %p73
      %s76 = sadd.s32 %s75, 1
      %p79 = scmp.eq.s32.totalorder %s16, 7
      %p80 = scmp.ne.s32.totalorder %s75, %s77
      %p81 = scmp.eq.s32.totalorder %s16, 0
      %p82 = por %p80, %p81
      %p83 = scmp.ne.s32.totalorder %s75, %s77
      %p84 = scmp.eq.s32.totalorder %s21, 7
      %p85 = por %p83, %p84
      %p86 = scmp.ne.s32.totalorder %s77, %s78
      %p87 = scmp.eq.s32.totalorder %s21, 0
      %p88 = por %p86, %p87
      %p89 = scmp.ne.s32.totalorder %s77, %s78
      %p90 = scmp.eq.s32.totalorder %s22, 7
      %p91 = por %p89, %p90
      %p93 = scmp.ne.s32.totalorder %s78, %s92
      %p94 = scmp.eq.s32.totalorder %s22, 0
      %p95 = por %p93, %p94
      %s97 = sadd.s32 %s96, 1
      %p100 = scmp.eq.s32.totalorder %s16, 7
      %p101 = scmp.ne.s32.totalorder %s96, %s98
      %p102 = scmp.eq.s32.totalorder %s16, 0
      %p103 = por %p101, %p102
      %p104 = scmp.ne.s32.totalorder %s96, %s98
      %p105 = scmp.eq.s32.totalorder %s21, 7
      %p106 = por %p104, %p105
      %p107 = scmp.ne.s32.totalorder %s98, %s99
      %p108 = scmp.eq.s32.totalorder %s21, 0
      %p109 = por %p107, %p108
      %p110 = scmp.ne.s32.totalorder %s98, %s99
      %p111 = scmp.eq.s32.totalorder %s22, 7
      %p112 = por %p110, %p111
      %p114 = scmp.ne.s32.totalorder %s99, %s113
      %p115 = scmp.eq.s32.totalorder %s22, 0
      %p116 = por %p114, %p115
      %s117 = ssub.s32 %s23, %s42
      %s118 = ssub.s32 %s24, %s38
      %s119 = sor.u32 %s117, %s118
      %p120 = scmp.eq.s32.totalorder %s119, 0
      %s122 = sadd.s32 %s121, 1
      %s123 = scalar_select %p120, %s121, %s122
      %p126 = pneg %p120
      %p127 = scmp.eq.s32.totalorder %s16, 7
      %p128 = por %p126, %p127
      %p129 = scmp.ne.s32.totalorder %s121, %s124
      %p130 = scmp.eq.s32.totalorder %s16, 0
      %p131 = por %p129, %p130
      %p132 = scmp.ne.s32.totalorder %s121, %s124
      %p133 = scmp.eq.s32.totalorder %s21, 7
      %p134 = por %p132, %p133
      %p135 = scmp.ne.s32.totalorder %s124, %s125
      %p136 = scmp.eq.s32.totalorder %s21, 0
      %p137 = por %p135, %p136
      %p138 = scmp.ne.s32.totalorder %s124, %s125
      %p139 = scmp.eq.s32.totalorder %s22, 7
      %p140 = por %p138, %p139
      %p142 = scmp.ne.s32.totalorder %s125, %s141
      %p143 = scmp.eq.s32.totalorder %s22, 0
      %p144 = por %p142, %p143
      %p145 = scmp.le.s32.totalorder 1, %s16
      %p146 = scmp.lt.s32.totalorder %s16, 9
      %p147 = pnand %p145, %p146
      %p148 = pneg %p147
      // Predicated region
      $region9: #{tpu_custom_call.1} parent=5 // pred_check
        _
      $region10: #{tpu_custom_call.1} parent=5 // pred_check_branch
        %150 = sbr.rel (%p147) target = $region12
      $region11: #{tpu_custom_call.1} parent=5 // pred_region
        %s151 = ssub.s32 %s16, 1
        // Predicated region
        $region13: #{tpu_custom_call.1} parent=11 // pred_check
          %p152 = pneg %p88
        $region14: #{tpu_custom_call.1} parent=11 // pred_check_branch
          %154 = sbr.rel (%p152) target = $region16
        $region15: #{tpu_custom_call.1} parent=11 // pred_region
          %156 = vsyncadd [#allocation6], 0
          %s157 = sshll.u32 %s1, 4
          %s158 = int_to_ptr.hbm [resolvable:$true] %s157
          %s159 = sshll.u32 [#allocation5], 4
          %s160 = int_to_ptr.vmem [resolvable:$true] %s159
          %165 = dma.hbm_to_vmem [thread:$0]  %s158, 2048, %s160, [#allocation6], 128, 128, 8
        $region16: #{tpu_custom_call.1} parent=11 // pred_fallthru
          _
        // Predicated region
        $region17: #{tpu_custom_call.1} parent=11 // pred_check
          %p166 = pneg %p109
        $region18: #{tpu_custom_call.1} parent=11 // pred_check_branch
          %168 = sbr.rel (%p166) target = $region20
        $region19: #{tpu_custom_call.1} parent=11 // pred_region
          %170 = vsyncadd [#allocation6], 0
          %s172 = sshll.u32 %s2, 4
          %s173 = int_to_ptr.hbm [resolvable:$true] %s172
          %s174 = sshll.u32 [#allocation7], 4
          %s175 = int_to_ptr.vmem [resolvable:$true] %s174
          %177 = dma.hbm_to_vmem [thread:$0]  %s173, 32, %s175, [#allocation6]
        $region20: #{tpu_custom_call.1} parent=11 // pred_fallthru
          _
      $region12: #{tpu_custom_call.1} parent=5 // pred_fallthru
        _
      %p178 = scmp.lt.s32.totalorder %s16, 8
      // Predicated region
      $region21: #{tpu_custom_call.1} parent=5 // pred_check
        %p179 = pneg %p178
      $region22: #{tpu_custom_call.1} parent=5 // pred_check_branch
        %181 = sbr.rel (%p179) target = $region24
      $region23: #{tpu_custom_call.1} parent=5 // pred_region
        // Predicated region
        $region25: #{tpu_custom_call.1} parent=23 // pred_check
          %p182 = pneg %p61
        $region26: #{tpu_custom_call.1} parent=23 // pred_check_branch
          %184 = sbr.rel (%p182) target = $region28
        $region27: #{tpu_custom_call.1} parent=23 // pred_region
          %s185 = sand.u32 %s51, 1
          %s186 = scalar_lea.sflag [#allocation3], %s185
          %s187 = sand.u32 %s51, 1
          %s188 = smul.addr %s187, 16
          %s189 = scalar_lea.vmem [#allocation2], %s188
          %s190 = smul.u32 %s24, 2
          %s191 = sadd.s32 %s190, %s25
          %s192 = smul.u32 4, %s191
          %194 = vsyncadd %s186, 0
          %s195 = smul.addr %s23, 16
          %s196 = sadd.s32 %s192, %s195
          %s197 = smul.addr %s196, 4
          %s198 = scalar_lea.hbm %s0, %s197
          %s199 = sshll.u32 %s198, 4
          %s200 = int_to_ptr.hbm [resolvable:$true] %s199
          %s201 = sshll.u32 %s189, 4
          %s202 = int_to_ptr.vmem [resolvable:$true] %s201
          %207 = dma.hbm_to_vmem [thread:$0]  %s200, 256, %s202, %s186, 64, 64, 4
        $region28: #{tpu_custom_call.1} parent=23 // pred_fallthru
          _
      $region24: #{tpu_custom_call.1} parent=5 // pred_fallthru
        _
      %p208 = scmp.le.s32.totalorder 1, %s16
      %p209 = scmp.lt.s32.totalorder %s16, 9
      %p210 = pnand %p208, %p209
      %p211 = pneg %p210
      // Predicated region
      $region29: #{tpu_custom_call.1} parent=5 // pred_check
        _
      $region30: #{tpu_custom_call.1} parent=5 // pred_check_branch
        %213 = sbr.rel (%p210) target = $region32
      $region31: #{tpu_custom_call.1} parent=5 // pred_region
        %s214 = ssub.s32 %s16, 1
        %s215 = sand.u32 %s54, 1
        %s216 = scalar_lea.sflag [#allocation3], %s215
        %s217 = sand.u32 %s54, 1
        %s218 = smul.addr %s217, 16
        %s219 = scalar_lea.vmem [#allocation2], %s218
        // Predicated region
        $region33: #{tpu_custom_call.1} parent=31 // pred_check
          %p220 = pneg %p67
        $region34: #{tpu_custom_call.1} parent=31 // pred_check_branch
          %222 = sbr.rel (%p220) target = $region36
        $region35: #{tpu_custom_call.1} parent=31 // pred_region
          %224 = dma.done %s216, 256
        $region36: #{tpu_custom_call.1} parent=31 // pred_fallthru
          _
        // Predicated region
        $region37: #{tpu_custom_call.1} parent=31 // pred_check
          %p225 = pneg %p88
        $region38: #{tpu_custom_call.1} parent=31 // pred_check_branch
          %227 = sbr.rel (%p225) target = $region40
        $region39: #{tpu_custom_call.1} parent=31 // pred_region
          %229 = dma.done [#allocation6], 2048
        $region40: #{tpu_custom_call.1} parent=31 // pred_fallthru
          _
        // Predicated region
        $region41: #{tpu_custom_call.1} parent=31 // pred_check
          %p230 = pneg %p109
        $region42: #{tpu_custom_call.1} parent=31 // pred_check_branch
          %232 = sbr.rel (%p230) target = $region44
        $region43: #{tpu_custom_call.1} parent=31 // pred_region
          %234 = dma.done [#allocation6], 32
        $region44: #{tpu_custom_call.1} parent=31 // pred_fallthru
          _
        %s235 = sand.u32 %s54, 1
        %s236 = scalar_lea.sflag [#allocation3], %s235
        %s237 = sand.u32 %s54, 1
        %s238 = smul.addr %s237, 16
        %s239 = scalar_lea.vmem [#allocation2], %s238
        %p240 = pneg %p67
        %p241 = pneg %p64
        %p242 = pneg %p88
        %p243 = pneg %p85
        %p244 = pneg %p109
        %p245 = pneg %p106
        %p246 = pneg %p137
        %p247 = pneg %p134
        %s248 = sand.u32 %s124, 1
        %s249 = scalar_lea.sflag [#allocation4], %s248
        %s250 = sand.u32 %s124, 1
        %s251 = smul.addr %s250, 8
        %s252 = scalar_lea.vmem [#allocation8], %s251
        %s253 = smul.u32 %s27, 2
        %s254 = sadd.s32 %s253, %s28
        %s255 = smul.u32 4, %s254
        %p256 = scmp.eq.s32.totalorder %s28, 0
        // Predicated region
        $region45: #{tpu_custom_call.1} parent=31 // pred_check
          %p257 = pneg %p256
        $region46: #{tpu_custom_call.1} parent=31 // pred_check_branch
          %259 = sbr.rel (%p257) target = $region48
        $region47: #{tpu_custom_call.1} parent=31 // pred_region
          %260 = vst [vmem:[%s252] sm:$0xff] -inf
        $region48: #{tpu_custom_call.1} parent=31 // pred_fallthru
          _
        %v261 = vld [vmem:[%s219] sm:$0xf]
        %v262 = vld [vmem:[%s219 + $0x4] sm:$0xf]
        %v263 = vld [vmem:[%s219 + $0x8] sm:$0xf]
        %v264 = vld [vmem:[%s219 + $0xc] sm:$0xf]
        %v265 = vld [vmem:[#allocation5] sm:$0xff]
        %v266 = vld [vmem:[#allocation5 + $0x8] sm:$0xff]
        %v267 = vld [vmem:[#allocation5 + $0x10] sm:$0xff]
        %v268 = vld [vmem:[#allocation5 + $0x18] sm:$0xff]
        %v269 = vld [vmem:[#allocation5 + $0x20] sm:$0xff]
        %v270 = vld [vmem:[#allocation5 + $0x28] sm:$0xff]
        %v271 = vld [vmem:[#allocation5 + $0x30] sm:$0xff]
        %v272 = vld [vmem:[#allocation5 + $0x38] sm:$0xff]
        %v273 = vld [vmem:[#allocation5 + $0x40] sm:$0xff]
        %v274 = vld [vmem:[#allocation5 + $0x48] sm:$0xff]
        %v275 = vld [vmem:[#allocation5 + $0x50] sm:$0xff]
        %v276 = vld [vmem:[#allocation5 + $0x58] sm:$0xff]
        %v277 = vld [vmem:[#allocation5 + $0x60] sm:$0xff]
        %v278 = vld [vmem:[#allocation5 + $0x68] sm:$0xff]
        %v279 = vld [vmem:[#allocation5 + $0x70] sm:$0xff]
        %v280 = vld [vmem:[#allocation5 + $0x78] sm:$0xff]
        %v281 = vld [vmem:[#allocation7] sm:$0x3]
        %v283 = vperm.slane %v281, 0
        %v284 = vperm.slane %v281, 1
        %v291 = vunpack.c.l.b16 %v261
        %v292 = vunpack.c.l.b16 %v262
        %v293 = vunpack.c.l.b16 %v263
        %v294 = vunpack.c.l.b16 %v264
        %v295 = vpack.c.b16 %v292, %v291
        %v296 = vpack.c.b16 %v294, %v293
        %v315 = vunpack.c.l.b16 %v265
        %v316 = vunpack.c.h.b16 %v265
        %v317 = vunpack.c.l.b16 %v266
        %v318 = vunpack.c.h.b16 %v266
        %v319 = vunpack.c.l.b16 %v267
        %v320 = vunpack.c.h.b16 %v267
        %v321 = vunpack.c.l.b16 %v268
        %v322 = vunpack.c.h.b16 %v268
        %v323 = vunpack.c.l.b16 %v269
        %v324 = vunpack.c.h.b16 %v269
        %v325 = vunpack.c.l.b16 %v270
        %v326 = vunpack.c.h.b16 %v270
        %v327 = vunpack.c.l.b16 %v271
        %v328 = vunpack.c.h.b16 %v271
        %v329 = vunpack.c.l.b16 %v272
        %v330 = vunpack.c.h.b16 %v272
        %v331 = vunpack.c.l.b16 %v273
        %v332 = vunpack.c.h.b16 %v273
        %v333 = vunpack.c.l.b16 %v274
        %v334 = vunpack.c.h.b16 %v274
        %v335 = vunpack.c.l.b16 %v275
        %v336 = vunpack.c.h.b16 %v275
        %v337 = vunpack.c.l.b16 %v276
        %v338 = vunpack.c.h.b16 %v276
        %v339 = vunpack.c.l.b16 %v277
        %v340 = vunpack.c.h.b16 %v277
        %v341 = vunpack.c.l.b16 %v278
        %v342 = vunpack.c.h.b16 %v278
        %v343 = vunpack.c.l.b16 %v279
        %v344 = vunpack.c.h.b16 %v279
        %v345 = vunpack.c.l.b16 %v280
        %v346 = vunpack.c.h.b16 %v280
        %v347 = vpack.c.b16 %v317, %v315
        %v348 = vpack.c.b16 %v318, %v316
        %v349 = vpack.c.b16 %v321, %v319
        %v350 = vpack.c.b16 %v322, %v320
        %v351 = vpack.c.b16 %v325, %v323
        %v352 = vpack.c.b16 %v326, %v324
        %v353 = vpack.c.b16 %v329, %v327
        %v354 = vpack.c.b16 %v330, %v328
        %v355 = vpack.c.b16 %v333, %v331
        %v356 = vpack.c.b16 %v334, %v332
        %v357 = vpack.c.b16 %v337, %v335
        %v358 = vpack.c.b16 %v338, %v336
        %v359 = vpack.c.b16 %v341, %v339
        %v360 = vpack.c.b16 %v342, %v340
        %v361 = vpack.c.b16 %v345, %v343
        %v362 = vpack.c.b16 %v346, %v344
        %379 = vmatpush.bf16.msra.mxu0 %v361
        %380 = vmatpush.bf16.msra.mxu0 %v359
        %381 = vmatpush.bf16.msra.mxu0 %v357
        %382 = vmatpush.bf16.msra.mxu0 %v355
        %383 = vmatpush.bf16.msra.mxu0 %v353
        %384 = vmatpush.bf16.msra.mxu0 %v351
        %385 = vmatpush.bf16.msra.mxu0 %v349
        %386 = vmatpush.bf16.msra.mxu0 %v347
        %387 = vmatmul.bf16.gmra.mxu0 %v295
        %v388 = vpop.f32.mrf.mxu0
        %v389 = vadd.f32 %v283, %v388
        %v390 = vpop.f32.mrf.mxu0
        %v391 = vadd.f32 %v283, %v390
        %392 = vmatmul.bf16.gmra.mxu0 %v296
        %v393 = vpop.f32.mrf.mxu0
        %v394 = vadd.f32 %v283, %v393
        %v395 = vpop.f32.mrf.mxu0
        %v396 = vadd.f32 %v283, %v395
        %397 = vdwg.mxu0
        %398 = vmatpush.bf16.msra.mxu0 %v362
        %399 = vmatpush.bf16.msra.mxu0 %v360
        %400 = vmatpush.bf16.msra.mxu0 %v358
        %401 = vmatpush.bf16.msra.mxu0 %v356
        %402 = vmatpush.bf16.msra.mxu0 %v354
        %403 = vmatpush.bf16.msra.mxu0 %v352
        %404 = vmatpush.bf16.msra.mxu0 %v350
        %405 = vmatpush.bf16.msra.mxu0 %v348
        %406 = vmatmul.bf16.gmra.mxu0 %v295
        %v407 = vpop.f32.mrf.mxu0
        %v408 = vadd.f32 %v284, %v407
        %v409 = vpop.f32.mrf.mxu0
        %v410 = vadd.f32 %v284, %v409
        %411 = vmatmul.bf16.gmra.mxu0 %v296
        %v412 = vpop.f32.mrf.mxu0
        %v413 = vadd.f32 %v284, %v412
        %v414 = vpop.f32.mrf.mxu0
        %v415 = vadd.f32 %v284, %v414
        %416 = vdwg.mxu0
        %v417 = vsub.f32 0.0, %v408
        %v418 = vsub.f32 0.0, %v410
        %v419 = vsub.f32 0.0, %v413
        %v420 = vsub.f32 0.0, %v415
        %v421 = vmul.f32 %v417, 1.442695
        %v422 = vpow.pop %v421
        %v423 = vmul.f32 %v418, 1.442695
        %v424 = vpow.pop %v423
        %v425 = vmul.f32 %v419, 1.442695
        %v426 = vpow.pop %v425
        %v427 = vmul.f32 %v420, 1.442695
        %v428 = vpow.pop %v427
        %v429 = vadd.f32 %v422, 1.0
        %v430 = vadd.f32 %v424, 1.0
        %v431 = vadd.f32 %v426, 1.0
        %v432 = vadd.f32 %v428, 1.0
        %v433 = vrcp.pop %v429
        %v434 = vrcp.pop %v430
        %v435 = vrcp.pop %v431
        %v436 = vrcp.pop %v432
        %v437 = vmul.f32 %v389, %v433
        %v438 = vmul.f32 %v391, %v434
        %v439 = vmul.f32 %v394, %v435
        %v440 = vmul.f32 %v396, %v436
        %v441 = vmax.f32 %v437, %v438
        %v442 = vmax.f32 %v439, %v440
        %v443 = vmax.f32 %v441, %v442
        %v444 = vld [vmem:[%s252] sm:$0xff]
        %v445 = vmax.f32 %v444, %v443
        %446 = vst [vmem:[%s252] sm:$0xff] %v445
        %s447 = sand.u32 %s124, 1
        %s448 = scalar_lea.sflag [#allocation4], %s447
        %s449 = sand.u32 %s124, 1
        %s450 = smul.addr %s449, 8
        %s451 = scalar_lea.vmem [#allocation8], %s450
        // Predicated region
        $region49: #{tpu_custom_call.1} parent=31 // pred_check
          %p452 = pneg %p134
        $region50: #{tpu_custom_call.1} parent=31 // pred_check_branch
          %454 = sbr.rel (%p452) target = $region52
        $region51: #{tpu_custom_call.1} parent=31 // pred_region
          %456 = vsyncadd %s448, 0
          %s457 = smul.addr %s26, 2
          %s458 = sadd.s32 %s27, %s457
          %s459 = smul.addr %s458, 8
          %s460 = scalar_lea.hbm %s3, %s459
          %s462 = sshll.u32 %s451, 4
          %s463 = int_to_ptr.vmem [resolvable:$true] %s462
          %s464 = sshll.u32 %s460, 4
          %s465 = int_to_ptr.hbm [resolvable:$true] %s464
          %467 = dma.vmem_to_hbm [thread:$0]  %s463, 128, %s465, %s448
        $region52: #{tpu_custom_call.1} parent=31 // pred_fallthru
          _
      $region32: #{tpu_custom_call.1} parent=5 // pred_fallthru
        _
      %p468 = scmp.le.s32.totalorder 2, %s16
      // Predicated region
      $region53: #{tpu_custom_call.1} parent=5 // pred_check
        %p469 = pneg %p468
      $region54: #{tpu_custom_call.1} parent=5 // pred_check_branch
        %471 = sbr.rel (%p469) target = $region56
      $region55: #{tpu_custom_call.1} parent=5 // pred_region
        %s472 = ssub.s32 %s16, 2
        // Predicated region
        $region57: #{tpu_custom_call.1} parent=55 // pred_check
          %p473 = pneg %p140
        $region58: #{tpu_custom_call.1} parent=55 // pred_check_branch
          %475 = sbr.rel (%p473) target = $region60
        $region59: #{tpu_custom_call.1} parent=55 // pred_region
          %s476 = sand.u32 %s125, 1
          %s477 = scalar_lea.sflag [#allocation4], %s476
          %s478 = sand.u32 %s125, 1
          %s479 = smul.addr %s478, 8
          %s480 = scalar_lea.vmem [#allocation8], %s479
          %482 = dma.done %s477, 128
        $region60: #{tpu_custom_call.1} parent=55 // pred_fallthru
          _
      $region56: #{tpu_custom_call.1} parent=5 // pred_fallthru
        _
    $region6: #{tpu_custom_call.1} parent=1 // loop_footer
      %s20 = sadd.s32 1, %s16
    $region7: #{tpu_custom_call.1} parent=1 // loop_footer_branch
      %15 = sbr.rel target = $region3
    $region8: #{tpu_custom_call.1} parent=1 // loop_exit
      _
    %483 = vsyncpa [#allocation3], 1
    %s484 = scalar_lea.sflag [#allocation3], 1
    %485 = vsyncpa %s484, 1
    %486 = vsyncpa [#allocation6], 1
    %487 = vsyncpa [#allocation4], 1
    %s488 = scalar_lea.sflag [#allocation4], 1
    %489 = vsyncpa %s488, 1

</llo_original>
